<compile_context>
chip_gen: v5e
topology: v5e:2x2
jax: 0.10.0
libtpu: 0.0.40
codegen_flags: <defaults>
</compile_context>

<pallas_src>
import jax
import jax.numpy as jnp
from jax.experimental import pallas as pl
from jax.experimental.pallas import tpu as pltpu


def linear_relu_kernel(wb_ref, xT_ref, o_ref):
    # wb_ref: SMEM ((IN+1)*OUT,) f32, row-major over (IN+1, OUT); last row = bias.
    # xT_ref: VMEM (IN, bt)  -- batch tile, lane-dense along the 128-lane axis.
    # o_ref : VMEM (OUT, bt) -- lane-dense output tile.
    x = xT_ref[...]
    in_f = x.shape[0]
    out_f = o_ref.shape[0]

    rows = []
    for o in range(out_f):                      # OUT is static (=4)
        acc = x[0:1, :] * wb_ref[0 * out_f + o]
        for k in range(1, in_f):                # IN is static (=3)
            acc = acc + x[k:k + 1, :] * wb_ref[k * out_f + o]
        acc = acc + wb_ref[in_f * out_f + o]    # bias (scalar from SMEM)
        rows.append(jnp.maximum(acc, 0.0))
    o_ref[...] = jnp.concatenate(rows, axis=0).astype(o_ref.dtype)


def linear_relu(x, w, b, *, batch_tile=2048, force_pallas=False):
    """x: (..., IN) , w: (IN, OUT) (pre-transposed PyTorch weight), b: (OUT,)."""
    orig_dtype = x.dtype
    lead = x.shape[:-1]
    in_f = x.shape[-1]
    out_f = w.shape[1]

    x2 = x.reshape(-1, in_f).astype(jnp.float32)
    B = x2.shape[0]
    w32 = w.astype(jnp.float32)
    b32 = b.astype(jnp.float32)

    # Tiny batches: the fused XLA expression beats pallas_call launch overhead.
    if not force_pallas and B < 1024:
        out = jnp.maximum(x2 @ w32 + b32, 0.0)
        return out.reshape(*lead, out_f).astype(orig_dtype)

    # Lane-dense: batch along the 128-lane axis.
    xT = x2.T                                   # (IN, B)
    B_pad = ((B + 127) // 128) * 128
    if B_pad != B:
        xT = jnp.pad(xT, ((0, 0), (0, B_pad - B)))

    # Largest tile <= batch_tile (multiple of 128) that divides B_pad exactly.
    bt = min(batch_tile, B_pad)
    while B_pad % bt:
        bt -= 128

    # Weight + bias as 16 SMEM scalars: wb[k*OUT + o] = w[k, o], wb[IN*OUT + o] = b[o].
    wb = jnp.concatenate([w32.reshape(-1), b32.reshape(-1)])

    outT = pl.pallas_call(
        linear_relu_kernel,
        out_shape=jax.ShapeDtypeStruct((out_f, B_pad), jnp.float32),
        grid=(B_pad // bt,),
        in_specs=[
            # Whole (IN+1)*OUT scalar vector lives in SMEM, untiled.
            pl.BlockSpec(memory_space=pltpu.MemorySpace.SMEM),
            # Lane-dense batch tile; IN (=3) equals the full sublane extent.
            pl.BlockSpec((in_f, bt), lambda i: (0, i)),
        ],
        out_specs=pl.BlockSpec((out_f, bt), lambda i: (0, i)),
        compiler_params=pltpu.CompilerParams(
            dimension_semantics=("parallel",)),
    )(wb, xT)

    out = outT[:, :B].T
    return out.reshape(*lead, out_f).astype(orig_dtype)


def init_params(key, in_features=3, out_features=4):
    # Mimic PyTorch Linear default init (uniform +/- 1/sqrt(in_features)).
    kw, kb = jax.random.split(key)
    bound = 1.0 / jnp.sqrt(jnp.float32(in_features))
    # PyTorch stores weight as (out, in); keep it pre-transposed as (in, out).
    w = jax.random.uniform(kw, (in_features, out_features), jnp.float32,
                           minval=-bound, maxval=bound)
    b = jax.random.uniform(kb, (out_features,), jnp.float32,
                           minval=-bound, maxval=bound)
    return w, b


if __name__ == "__main__":
    key = jax.random.PRNGKey(0)
    k_x, k_x2, k_p = jax.random.split(key, 3)

    B, IN, OUT = 8, 3, 4
    w, b = init_params(k_p, IN, OUT)

    # Small batch (forced through the Pallas path so the kernel runs).
    x = jax.random.normal(k_x, (B, IN), jnp.float32)
    out = linear_relu(x, w, b, force_pallas=True)
    jax.block_until_ready(out)
    ref = jnp.maximum(x @ w + b, 0.0)
    assert out.shape == (B, OUT)
    assert jnp.allclose(out, ref, atol=1e-5, rtol=1e-5)

    # Larger batch: exercises padding (4093 -> 4096) and a 2-step grid
    # (both TensorCores on v7x).
    B2 = 4093
    x2 = jax.random.normal(k_x2, (B2, IN), jnp.float32)
    out2 = linear_relu(x2, w, b)
    jax.block_until_ready(out2)
    ref2 = jnp.maximum(x2 @ w + b, 0.0)
    assert out2.shape == (B2, OUT)
    assert jnp.allclose(out2, ref2, atol=1e-5, rtol=1e-5)

    print("KERNEL_OK")
</pallas_src>

<mosaic_0001>
module attributes {stable_mosaic.version = 11 : i64} {
  func.func @linear_relu_kernel(%arg0: i32, %arg1: memref<16xf32, #tpu.memory_space<smem>>, %arg2: memref<3x128xf32, #tpu.memory_space<vmem>>, %arg3: memref<4x128xf32, #tpu.memory_space<vmem>>) attributes {dimension_semantics = [#tpu.dimension_semantics<parallel>], iteration_bounds = array<i64: 1>, scalar_prefetch = 0 : i64, scratch_operands = 0 : i64, tpu.core_type = #tpu.core_type<tc>, window_params = [{transform_indices = @transform_0, window_bounds = array<i64: 16>}, {transform_indices = @transform_1, window_bounds = array<i64: 3, 128>}, {transform_indices = @transform_2, window_bounds = array<i64: 4, 128>}]} {
    %c0 = arith.constant 0 : index
    %c0_0 = arith.constant 0 : index
    %0 = vector.load %arg2[%c0, %c0_0] : memref<3x128xf32, #tpu.memory_space<vmem>>, vector<3x128xf32>
    %1 = vector.extract_strided_slice %0 {offsets = [0, 0], sizes = [1, 128], strides = [1, 1]} : vector<3x128xf32> to vector<1x128xf32>
    %c0_1 = arith.constant 0 : index
    %2 = memref.load %arg1[%c0_1] : memref<16xf32, #tpu.memory_space<smem>>
    %3 = vector.broadcast %2 : f32 to vector<1x128xf32>
    %4 = arith.mulf %1, %3 : vector<1x128xf32>
    %5 = vector.extract_strided_slice %0 {offsets = [1, 0], sizes = [1, 128], strides = [1, 1]} : vector<3x128xf32> to vector<1x128xf32>
    %c4 = arith.constant 4 : index
    %6 = memref.load %arg1[%c4] : memref<16xf32, #tpu.memory_space<smem>>
    %7 = vector.broadcast %6 : f32 to vector<1x128xf32>
    %8 = arith.mulf %5, %7 : vector<1x128xf32>
    %9 = arith.addf %4, %8 : vector<1x128xf32>
    %10 = vector.extract_strided_slice %0 {offsets = [2, 0], sizes = [1, 128], strides = [1, 1]} : vector<3x128xf32> to vector<1x128xf32>
    %c8 = arith.constant 8 : index
    %11 = memref.load %arg1[%c8] : memref<16xf32, #tpu.memory_space<smem>>
    %12 = vector.broadcast %11 : f32 to vector<1x128xf32>
    %13 = arith.mulf %10, %12 : vector<1x128xf32>
    %14 = arith.addf %9, %13 : vector<1x128xf32>
    %c12 = arith.constant 12 : index
    %15 = memref.load %arg1[%c12] : memref<16xf32, #tpu.memory_space<smem>>
    %16 = vector.broadcast %15 : f32 to vector<1x128xf32>
    %17 = arith.addf %14, %16 : vector<1x128xf32>
    %cst = arith.constant 0.000000e+00 : f32
    %18 = vector.broadcast %cst : f32 to vector<1x128xf32>
    %19 = arith.maximumf %17, %18 : vector<1x128xf32>
    %20 = vector.extract_strided_slice %0 {offsets = [0, 0], sizes = [1, 128], strides = [1, 1]} : vector<3x128xf32> to vector<1x128xf32>
    %c1 = arith.constant 1 : index
    %21 = memref.load %arg1[%c1] : memref<16xf32, #tpu.memory_space<smem>>
    %22 = vector.broadcast %21 : f32 to vector<1x128xf32>
    %23 = arith.mulf %20, %22 : vector<1x128xf32>
    %24 = vector.extract_strided_slice %0 {offsets = [1, 0], sizes = [1, 128], strides = [1, 1]} : vector<3x128xf32> to vector<1x128xf32>
    %c5 = arith.constant 5 : index
    %25 = memref.load %arg1[%c5] : memref<16xf32, #tpu.memory_space<smem>>
    %26 = vector.broadcast %25 : f32 to vector<1x128xf32>
    %27 = arith.mulf %24, %26 : vector<1x128xf32>
    %28 = arith.addf %23, %27 : vector<1x128xf32>
    %29 = vector.extract_strided_slice %0 {offsets = [2, 0], sizes = [1, 128], strides = [1, 1]} : vector<3x128xf32> to vector<1x128xf32>
    %c9 = arith.constant 9 : index
    %30 = memref.load %arg1[%c9] : memref<16xf32, #tpu.memory_space<smem>>
    %31 = vector.broadcast %30 : f32 to vector<1x128xf32>
    %32 = arith.mulf %29, %31 : vector<1x128xf32>
    %33 = arith.addf %28, %32 : vector<1x128xf32>
    %c13 = arith.constant 13 : index
    %34 = memref.load %arg1[%c13] : memref<16xf32, #tpu.memory_space<smem>>
    %35 = vector.broadcast %34 : f32 to vector<1x128xf32>
    %36 = arith.addf %33, %35 : vector<1x128xf32>
    %cst_2 = arith.constant 0.000000e+00 : f32
    %37 = vector.broadcast %cst_2 : f32 to vector<1x128xf32>
    %38 = arith.maximumf %36, %37 : vector<1x128xf32>
    %39 = vector.extract_strided_slice %0 {offsets = [0, 0], sizes = [1, 128], strides = [1, 1]} : vector<3x128xf32> to vector<1x128xf32>
    %c2 = arith.constant 2 : index
    %40 = memref.load %arg1[%c2] : memref<16xf32, #tpu.memory_space<smem>>
    %41 = vector.broadcast %40 : f32 to vector<1x128xf32>
    %42 = arith.mulf %39, %41 : vector<1x128xf32>
    %43 = vector.extract_strided_slice %0 {offsets = [1, 0], sizes = [1, 128], strides = [1, 1]} : vector<3x128xf32> to vector<1x128xf32>
    %c6 = arith.constant 6 : index
    %44 = memref.load %arg1[%c6] : memref<16xf32, #tpu.memory_space<smem>>
    %45 = vector.broadcast %44 : f32 to vector<1x128xf32>
    %46 = arith.mulf %43, %45 : vector<1x128xf32>
    %47 = arith.addf %42, %46 : vector<1x128xf32>
    %48 = vector.extract_strided_slice %0 {offsets = [2, 0], sizes = [1, 128], strides = [1, 1]} : vector<3x128xf32> to vector<1x128xf32>
    %c10 = arith.constant 10 : index
    %49 = memref.load %arg1[%c10] : memref<16xf32, #tpu.memory_space<smem>>
    %50 = vector.broadcast %49 : f32 to vector<1x128xf32>
    %51 = arith.mulf %48, %50 : vector<1x128xf32>
    %52 = arith.addf %47, %51 : vector<1x128xf32>
    %c14 = arith.constant 14 : index
    %53 = memref.load %arg1[%c14] : memref<16xf32, #tpu.memory_space<smem>>
    %54 = vector.broadcast %53 : f32 to vector<1x128xf32>
    %55 = arith.addf %52, %54 : vector<1x128xf32>
    %cst_3 = arith.constant 0.000000e+00 : f32
    %56 = vector.broadcast %cst_3 : f32 to vector<1x128xf32>
    %57 = arith.maximumf %55, %56 : vector<1x128xf32>
    %58 = vector.extract_strided_slice %0 {offsets = [0, 0], sizes = [1, 128], strides = [1, 1]} : vector<3x128xf32> to vector<1x128xf32>
    %c3 = arith.constant 3 : index
    %59 = memref.load %arg1[%c3] : memref<16xf32, #tpu.memory_space<smem>>
    %60 = vector.broadcast %59 : f32 to vector<1x128xf32>
    %61 = arith.mulf %58, %60 : vector<1x128xf32>
    %62 = vector.extract_strided_slice %0 {offsets = [1, 0], sizes = [1, 128], strides = [1, 1]} : vector<3x128xf32> to vector<1x128xf32>
    %c7 = arith.constant 7 : index
    %63 = memref.load %arg1[%c7] : memref<16xf32, #tpu.memory_space<smem>>
    %64 = vector.broadcast %63 : f32 to vector<1x128xf32>
    %65 = arith.mulf %62, %64 : vector<1x128xf32>
    %66 = arith.addf %61, %65 : vector<1x128xf32>
    %67 = vector.extract_strided_slice %0 {offsets = [2, 0], sizes = [1, 128], strides = [1, 1]} : vector<3x128xf32> to vector<1x128xf32>
    %c11 = arith.constant 11 : index
    %68 = memref.load %arg1[%c11] : memref<16xf32, #tpu.memory_space<smem>>
    %69 = vector.broadcast %68 : f32 to vector<1x128xf32>
    %70 = arith.mulf %67, %69 : vector<1x128xf32>
    %71 = arith.addf %66, %70 : vector<1x128xf32>
    %c15 = arith.constant 15 : index
    %72 = memref.load %arg1[%c15] : memref<16xf32, #tpu.memory_space<smem>>
    %73 = vector.broadcast %72 : f32 to vector<1x128xf32>
    %74 = arith.addf %71, %73 : vector<1x128xf32>
    %cst_4 = arith.constant 0.000000e+00 : f32
    %75 = vector.broadcast %cst_4 : f32 to vector<1x128xf32>
    %76 = arith.maximumf %74, %75 : vector<1x128xf32>
    %77 = tpu.concatenate %19, %38, %57, %76 in 0 : vector<1x128xf32>, vector<1x128xf32>, vector<1x128xf32>, vector<1x128xf32> -> vector<4x128xf32>
    %c0_5 = arith.constant 0 : index
    %c0_6 = arith.constant 0 : index
    %78 = vector.load %arg3[%c0_5, %c0_6] : memref<4x128xf32, #tpu.memory_space<vmem>>, vector<4x128xf32>
    tpu.vector_store %arg3[%c0_5, %c0_6], %77 {strides = array<i32>} : memref<4x128xf32, #tpu.memory_space<vmem>>, vector<4x128xf32>,
    return
  }
  func.func @transform_0(%arg0: i32) -> i32 {
    %c0_i32 = arith.constant 0 : i32
    %c0_i32_0 = arith.constant 0 : i32
    return %c0_i32 : i32
  }
  func.func @transform_1(%arg0: i32) -> (i32, i32) {
    %c0_i32 = arith.constant 0 : i32
    %c0_i32_0 = arith.constant 0 : i32
    return %c0_i32, %arg0 : i32, i32
  }
  func.func @transform_2(%arg0: i32) -> (i32, i32) {
    %c0_i32 = arith.constant 0 : i32
    %c0_i32_0 = arith.constant 0 : i32
    return %c0_i32, %arg0 : i32, i32
  }
}

</mosaic_0001>

<llo_original>
// kernel: tpu_custom_call.1
$region0: #{tpu_custom_call.1}
  #allocation0 [shape = 'u32[]', space=smem, size = 0x4, offset = 0x4, fixed_abs, tag = 'smem constant byte address 0x4 - core index']
  #allocation1 [shape = 'u32[72,128]{1,0:T(1,128)}', space=vmem, size = 0x9000, scoped, tag = 'internal scratch']
  %s0 = inlined_call_operand.hbm [shape: f32[16], index: 0, kind: input, shape index: {}]
  %s1 = inlined_call_operand.hbm [shape: f32[3,128], index: 1, kind: input, shape index: {}]
  %s2 = inlined_call_operand.hbm [shape: f32[4,128], index: 2, kind: output, shape index: {}]
  %s3 = sld [smem:[#allocation0]]
  $region26: #{tpu_custom_call.1} parent=0
    _
  %s5 = ssub.s32 1, %s3
  %s6 = scalar_select 0, %s5, %s3
  $region1: #{tpu_custom_call.1} parent=0
    #allocation2 [shape = 'u8[512]{0}', space=smem, size = 0x200, scoped, tag = 'input window, operand 0, single buffered']
    #allocation3 [shape = 's32[1]{0}', space=sflag, size = 0x4, scoped, tag = 'scoped memory for tpu_custom_call.1']
    #allocation4 [shape = 's32[1]{0}', space=sflag, size = 0x4, scoped, tag = 'scoped memory for tpu_custom_call.1']
    #allocation5 [shape = 's32[1]{0}', space=sflag, size = 0x4, scoped, tag = 'scoped memory for tpu_custom_call.1']
    #allocation6 [shape = 'u8[2048]{0}', space=vmem, size = 0x800, scoped, tag = 'input window, operand 1, single buffered']
    #allocation7 [shape = 'u8[2048]{0}', space=vmem, size = 0x800, scoped, tag = 'output window, operand 0, single buffered']
    %7 = vsyncpa [#allocation5], 0
    %8 = vsyncpa [#allocation3], 0
    %9 = vsyncpa [#allocation4], 0
    // Predicated region
    $region2: #{tpu_custom_call.1} parent=1 // pred_check
      _
    $region3: #{tpu_custom_call.1} parent=1 // pred_check_branch
      %11 = sbr.rel (0) target = $region5
    $region4: #{tpu_custom_call.1} parent=1 // pred_region
      %13 = vsyncadd [#allocation5], 0
      %s15 = sshll.u32 %s0, 4
      %s16 = int_to_ptr.hbm [resolvable:$true] %s15
      %18 = dma.hbm_to_smem %s16, 16, [#allocation2], [#allocation5]
    $region5: #{tpu_custom_call.1} parent=1 // pred_fallthru
      _
    // Predicated region
    $region6: #{tpu_custom_call.1} parent=1 // pred_check
      _
    $region7: #{tpu_custom_call.1} parent=1 // pred_check_branch
      %20 = sbr.rel (0) target = $region9
    $region8: #{tpu_custom_call.1} parent=1 // pred_region
      %22 = vsyncadd [#allocation3], 0
      %s24 = sshll.u32 %s1, 4
      %s25 = int_to_ptr.hbm [resolvable:$true] %s24
      %s26 = sshll.u32 [#allocation6], 4
      %s27 = int_to_ptr.vmem [resolvable:$true] %s26
      %29 = dma.hbm_to_vmem [thread:$0]  %s25, 64, %s27, [#allocation3]
    $region9: #{tpu_custom_call.1} parent=1 // pred_fallthru
      _
    // Predicated region
    $region10: #{tpu_custom_call.1} parent=1 // pred_check
      _
    $region11: #{tpu_custom_call.1} parent=1 // pred_check_branch
      %31 = sbr.rel (0) target = $region13
    $region12: #{tpu_custom_call.1} parent=1 // pred_region
      %33 = dma.done [#allocation5], 16
    $region13: #{tpu_custom_call.1} parent=1 // pred_fallthru
      _
    // Predicated region
    $region14: #{tpu_custom_call.1} parent=1 // pred_check
      _
    $region15: #{tpu_custom_call.1} parent=1 // pred_check_branch
      %35 = sbr.rel (0) target = $region17
    $region16: #{tpu_custom_call.1} parent=1 // pred_region
      %37 = dma.done [#allocation3], 64
    $region17: #{tpu_custom_call.1} parent=1 // pred_fallthru
      _
    %38 = sfence
    %v39 = vld [vmem:[#allocation6] sm:$0x7]
    %s40 = sld [smem:[#allocation2]]
    %v41 = vstv %s40
    %v42 = vmul.f32 %v39, %v41
    %s43 = sld [smem:[#allocation2 + $0x4]]
    %v44 = vstv %s43
    %v45 = vmul.f32 %v39, %v44
    %v47 = vrot.slane %v45, 1
    %v49 = vadd.f32 %v42, %v47
    %s50 = sld [smem:[#allocation2 + $0x8]]
    %v51 = vstv %s50
    %v52 = vmul.f32 %v39, %v51
    %v54 = vrot.slane %v52, 2
    %v56 = vadd.f32 %v49, %v54
    %s57 = sld [smem:[#allocation2 + $0xc]]
    %v58 = vstv %s57
    %v59 = vadd.f32 %v56, %v58
    %v60 = vmax.f32 %v59, 0.0
    %s61 = sld [smem:[#allocation2 + $0x1]]
    %v62 = vstv %s61
    %v63 = vmul.f32 %v39, %v62
    %s64 = sld [smem:[#allocation2 + $0x5]]
    %v65 = vstv %s64
    %v66 = vmul.f32 %v39, %v65
    %v68 = vrot.slane %v66, 1
    %v70 = vadd.f32 %v63, %v68
    %s71 = sld [smem:[#allocation2 + $0x9]]
    %v72 = vstv %s71
    %v73 = vmul.f32 %v39, %v72
    %v75 = vrot.slane %v73, 2
    %v77 = vadd.f32 %v70, %v75
    %s78 = sld [smem:[#allocation2 + $0xd]]
    %v79 = vstv %s78
    %v80 = vadd.f32 %v77, %v79
    %v81 = vmax.f32 %v80, 0.0
    %s82 = sld [smem:[#allocation2 + $0x2]]
    %v83 = vstv %s82
    %v84 = vmul.f32 %v39, %v83
    %s85 = sld [smem:[#allocation2 + $0x6]]
    %v86 = vstv %s85
    %v87 = vmul.f32 %v39, %v86
    %v89 = vrot.slane %v87, 1
    %v91 = vadd.f32 %v84, %v89
    %s92 = sld [smem:[#allocation2 + $0xa]]
    %v93 = vstv %s92
    %v94 = vmul.f32 %v39, %v93
    %v96 = vrot.slane %v94, 2
    %v98 = vadd.f32 %v91, %v96
    %s99 = sld [smem:[#allocation2 + $0xe]]
    %v100 = vstv %s99
    %v101 = vadd.f32 %v98, %v100
    %v102 = vmax.f32 %v101, 0.0
    %s103 = sld [smem:[#allocation2 + $0x3]]
    %v104 = vstv %s103
    %v105 = vmul.f32 %v39, %v104
    %s106 = sld [smem:[#allocation2 + $0x7]]
    %v107 = vstv %s106
    %v108 = vmul.f32 %v39, %v107
    %v110 = vrot.slane %v108, 1
    %v112 = vadd.f32 %v105, %v110
    %s113 = sld [smem:[#allocation2 + $0xb]]
    %v114 = vstv %s113
    %v115 = vmul.f32 %v39, %v114
    %v117 = vrot.slane %v115, 2
    %v119 = vadd.f32 %v112, %v117
    %s120 = sld [smem:[#allocation2 + $0xf]]
    %v121 = vstv %s120
    %v122 = vadd.f32 %v119, %v121
    %v123 = vmax.f32 %v122, 0.0
    %v125 = vrot.slane %v81, 7
    %v128 = vrot.slane %v102, 6
    %v131 = vrot.slane %v123, 5
    %vm133 = vcmask 1040384
    %v134 = vsel %vm133, %v60, %v125
    %vm135 = vcmask 1041408
    %v136 = vsel %vm135, %v134, %v128
    %vm137 = vcmask 1042432
    %v138 = vsel %vm137, %v136, %v131
    %139 = vst [vmem:[#allocation7] sm:$0xf] %v138
    // Predicated region
    $region18: #{tpu_custom_call.1} parent=1 // pred_check
      _
    $region19: #{tpu_custom_call.1} parent=1 // pred_check_branch
      %141 = sbr.rel (0) target = $region21
    $region20: #{tpu_custom_call.1} parent=1 // pred_region
      %143 = vsyncadd [#allocation4], 0
      %s145 = sshll.u32 [#allocation7], 4
      %s146 = int_to_ptr.vmem [resolvable:$true] %s145
      %s147 = sshll.u32 %s2, 4
      %s148 = int_to_ptr.hbm [resolvable:$true] %s147
      %150 = dma.vmem_to_hbm [thread:$0]  %s146, 64, %s148, [#allocation4]
    $region21: #{tpu_custom_call.1} parent=1 // pred_fallthru
      _
    // Predicated region
    $region22: #{tpu_custom_call.1} parent=1 // pred_check
      _
    $region23: #{tpu_custom_call.1} parent=1 // pred_check_branch
      %152 = sbr.rel (0) target = $region25
    $region24: #{tpu_custom_call.1} parent=1 // pred_region
      %154 = dma.done [#allocation4], 64
    $region25: #{tpu_custom_call.1} parent=1 // pred_fallthru
      _
    %155 = vsyncpa [#allocation3], 1
    %156 = vsyncpa [#allocation4], 1
    %157 = vsyncpa [#allocation5], 1

</llo_original>
